<compile_context>
chip_gen: v6e
topology: v6e:2x2x1
jax: 0.10.0
libtpu: 0.0.40
codegen_flags: <defaults>
</compile_context>

<pallas_src>
import jax
import jax.numpy as jnp
from jax.experimental import pallas as pl
from jax.experimental.pallas import tpu as pltpu

_LANE = 128
_VMEM_LIMIT_BYTES = 32 << 20  # safe on v5e/v6e/v7x; set explicitly below


def _round_up(n, m):
    return (n + m - 1) // m * m


def _linear_kernel(x_ref, w_ref, b_ref, o_ref):
    # x_ref: (tm, F)       activations
    # w_ref: (F, C_pad)    weight, pre-transposed at prep time (weight-stationary)
    # b_ref: (1, C_pad)    bias, lane-dense
    # o_ref: (tm, C_pad)   lane-dense output slab (unmasked vst)
    acc = jnp.dot(x_ref[...], w_ref[...], preferred_element_type=jnp.float32)
    o_ref[...] = (acc + b_ref[...]).astype(o_ref.dtype)


def prepare_meta_learner_params(weight, bias):
    """One-time (init-time) param prep: transpose to [F, C_pad] and lane-pad.

    weight: [out_classes, in_features]  (PyTorch nn.Linear layout)
    bias:   [out_classes]
    Returns (w_pad [F, C_pad], b_pad [1, C_pad]).
    """
    out_classes, in_features = weight.shape
    c_pad = _round_up(out_classes, _LANE)
    w_pad = (
        jnp.zeros((in_features, c_pad), weight.dtype)
        .at[:, :out_classes]
        .set(weight.T)
    )
    b_pad = jnp.zeros((1, c_pad), bias.dtype).at[0, :out_classes].set(bias)
    return w_pad, b_pad


def meta_learner_forward(x, w_pad, b_pad, out_classes, *, max_batch_tile=1024):
    """MetaLearner.forward: flatten(start_dim=1) then Linear.

    x:      [batch, input_channels, out_classes] (any [batch, ...] flattening to F)
    w_pad:  [F, C_pad]   from prepare_meta_learner_params
    b_pad:  [1, C_pad]
    """
    batch = x.shape[0]
    x_flat = x.reshape(batch, -1)  # nn.Flatten() — free bitcast
    in_features = x_flat.shape[1]
    f_w, c_pad = w_pad.shape
    assert f_w == in_features

    out_dtype = x_flat.dtype
    x_item = jnp.dtype(x_flat.dtype).itemsize
    w_item = jnp.dtype(w_pad.dtype).itemsize
    b_item = jnp.dtype(b_pad.dtype).itemsize
    out_item = jnp.dtype(out_dtype).itemsize

    # Sublane multiple for the activation dtype (8 for f32, 16 for bf16).
    sublane = 16 if x_flat.dtype == jnp.bfloat16 else 8

    # --- VMEM-driven batch tile ---------------------------------------------
    # resident (Buffered(1)) weight + bias, double-buffered x and out tiles.
    budget = int(_VMEM_LIMIT_BYTES * 0.75)
    resident = in_features * c_pad * w_item + c_pad * b_item
    per_row = 2 * in_features * x_item + 2 * c_pad * out_item
    avail = budget - resident
    if avail >= per_row * sublane:
        tm_vmem = (avail // per_row) // sublane * sublane
    else:
        # TODO(synk): K-axis tiling with an accumulator would be needed here.
        tm_vmem = sublane

    # >=2 grid steps when batch >= 2*sublane so v7x can use both TensorCores.
    tm_split = _round_up(max(pl.cdiv(batch, 2), 1), sublane)
    tm = max(sublane, min(tm_split, tm_vmem, max_batch_tile))

    grid = (pl.cdiv(batch, tm),)  # partial last block, no x padding

    cost = pl.CostEstimate(
        flops=2 * batch * in_features * c_pad,
        transcendentals=0,
        bytes_accessed=(
            batch * in_features * x_item          # x streamed once
            + in_features * c_pad * w_item        # weight (resident, read once)
            + c_pad * b_item                      # bias
            + batch * c_pad * out_item            # output
        ),
    )

    out = pl.pallas_call(
        _linear_kernel,
        out_shape=jax.ShapeDtypeStruct((batch, c_pad), out_dtype),
        grid=grid,
        in_specs=[
            # x: tiled along batch (partial last block handled by Pallas).
            pl.BlockSpec((tm, in_features), lambda i: (i, 0)),
            # weight/bias: constant block index -> resident, single-buffered.
            pl.BlockSpec(
                (in_features, c_pad),
                lambda i: (0, 0),
                pipeline_mode=pl.Buffered(1),
            ),
            pl.BlockSpec((1, c_pad), lambda i: (0, 0), pipeline_mode=pl.Buffered(1)),
        ],
        out_specs=pl.BlockSpec((tm, c_pad), lambda i: (i, 0)),
        compiler_params=pltpu.CompilerParams(
            dimension_semantics=("parallel",),
            vmem_limit_bytes=_VMEM_LIMIT_BYTES,
        ),
        cost_estimate=cost,
    )(x_flat, w_pad, b_pad)

    # Strip lane padding (cheap static slice in the wrapper).
    return out[:batch, :out_classes]


if __name__ == "__main__":
    # Small, forward-consistent shapes: x is [batch, input_channels, out_classes].
    batch = 2
    input_channels = 4
    out_classes = 8
    in_features = input_channels * out_classes

    key = jax.random.PRNGKey(0)
    kx, kw, kb = jax.random.split(key, 3)

    # Deterministic synthetic parameters (PyTorch-default-style uniform range).
    bound = 1.0 / (in_features ** 0.5)
    weight = jax.random.uniform(
        kw, (out_classes, in_features), jnp.float32, minval=-bound, maxval=bound
    )
    bias = jax.random.uniform(
        kb, (out_classes,), jnp.float32, minval=-bound, maxval=bound
    )

    x = jax.random.normal(kx, (batch, input_channels, out_classes), jnp.float32)

    # One-time param prep (outside the hot path), then the forward pass.
    w_pad, b_pad = prepare_meta_learner_params(weight, bias)
    y = meta_learner_forward(x, w_pad, b_pad, out_classes)
    jax.block_until_ready(y)

    # Reference check against plain JAX (same semantics as the PyTorch module).
    y_ref = x.reshape(batch, -1) @ weight.T + bias
    assert y.shape == (batch, out_classes)
    assert jnp.allclose(y, y_ref, atol=1e-5, rtol=1e-5)

    print("KERNEL_OK")
</pallas_src>

<mosaic_0001>
module attributes {stable_mosaic.version = 11 : i64} {
  func.func @_linear_kernel(%arg0: i32, %arg1: memref<8x32xf32, #tpu.memory_space<vmem>>, %arg2: memref<32x128xf32, #tpu.memory_space<vmem>>, %arg3: memref<1x128xf32, #tpu.memory_space<vmem>>, %arg4: memref<8x128xf32, #tpu.memory_space<vmem>>) attributes {dimension_semantics = [#tpu.dimension_semantics<parallel>], iteration_bounds = array<i64: 1>, scalar_prefetch = 0 : i64, scratch_operands = 0 : i64, tpu.core_type = #tpu.core_type<tc>, window_params = [{transform_indices = @transform_0, window_bounds = array<i64: 8, 32>}, {pipeline_mode = #tpu.pipeline_mode<synchronous>, transform_indices = @transform_1, window_bounds = array<i64: 32, 128>}, {pipeline_mode = #tpu.pipeline_mode<synchronous>, transform_indices = @transform_2, window_bounds = array<i64: 1, 128>}, {transform_indices = @transform_3, window_bounds = array<i64: 8, 128>}]} {
    %c0 = arith.constant 0 : index
    %c0_0 = arith.constant 0 : index
    %0 = vector.load %arg1[%c0, %c0_0] : memref<8x32xf32, #tpu.memory_space<vmem>>, vector<8x32xf32>
    %c0_1 = arith.constant 0 : index
    %c0_2 = arith.constant 0 : index
    %1 = vector.load %arg2[%c0_1, %c0_2] : memref<32x128xf32, #tpu.memory_space<vmem>>, vector<32x128xf32>
    %cst = arith.constant dense<0.000000e+00> : vector<8x128xf32>
    %2 = tpu.matmul %0, %1, %cst {dimension_numbers = #tpu.dot_dimension_numbers<[1], [0], [0], [1], [0, 0, 1, 1], [], []>} : vector<8x32xf32>, vector<32x128xf32>, vector<8x128xf32> -> vector<8x128xf32>
    %c0_3 = arith.constant 0 : index
    %c0_4 = arith.constant 0 : index
    %3 = vector.load %arg3[%c0_3, %c0_4] : memref<1x128xf32, #tpu.memory_space<vmem>>, vector<1x128xf32>
    %4 = vector.broadcast %3 : vector<1x128xf32> to vector<8x128xf32>
    %5 = arith.addf %2, %4 : vector<8x128xf32>
    %c0_5 = arith.constant 0 : index
    %c0_6 = arith.constant 0 : index
    %6 = vector.load %arg4[%c0_5, %c0_6] : memref<8x128xf32, #tpu.memory_space<vmem>>, vector<8x128xf32>
    tpu.vector_store %arg4[%c0_5, %c0_6], %5 {strides = array<i32>} : memref<8x128xf32, #tpu.memory_space<vmem>>, vector<8x128xf32>,
    return
  }
  func.func @transform_0(%arg0: i32) -> (i32, i32) {
    %c0_i32 = arith.constant 0 : i32
    %c0_i32_0 = arith.constant 0 : i32
    return %arg0, %c0_i32 : i32, i32
  }
  func.func @transform_1(%arg0: i32) -> (i32, i32) {
    %c0_i32 = arith.constant 0 : i32
    %c0_i32_0 = arith.constant 0 : i32
    %c0_i32_1 = arith.constant 0 : i32
    return %c0_i32, %c0_i32_0 : i32, i32
  }
  func.func @transform_2(%arg0: i32) -> (i32, i32) {
    %c0_i32 = arith.constant 0 : i32
    %c0_i32_0 = arith.constant 0 : i32
    %c0_i32_1 = arith.constant 0 : i32
    return %c0_i32, %c0_i32_0 : i32, i32
  }
  func.func @transform_3(%arg0: i32) -> (i32, i32) {
    %c0_i32 = arith.constant 0 : i32
    %c0_i32_0 = arith.constant 0 : i32
    return %arg0, %c0_i32 : i32, i32
  }
}

</mosaic_0001>

<llo_original>
// kernel: tpu_custom_call.1
$region0: #{tpu_custom_call.1}
  #allocation0 [shape = 'u32[]', space=smem, size = 0x4, offset = 0x4, fixed_abs, tag = 'smem constant byte address 0x4 - core index']
  #allocation1 [shape = 'u32[144,128]{1,0:T(1,128)}', space=vmem, size = 0x12000, scoped, tag = 'internal scratch']
  %s0 = inlined_call_operand.hbm [shape: f32[2,32], index: 0, kind: input, shape index: {}]
  %s1 = inlined_call_operand.hbm [shape: f32[32,128], index: 1, kind: input, shape index: {}]
  %s2 = inlined_call_operand.vmem [shape: f32[1,128], index: 2, kind: input, shape index: {}]
  %s3 = inlined_call_operand.hbm [shape: f32[2,128], index: 3, kind: output, shape index: {}]
  %s4 = sld [smem:[#allocation0]]
  $region30: #{tpu_custom_call.1} parent=0
    _
  %s6 = ssub.s32 1, %s4
  %s7 = scalar_select 0, %s6, %s4
  $region1: #{tpu_custom_call.1} parent=0
    #allocation2 [shape = 'u8[4096]{0}', space=vmem, size = 0x1000, scoped, tag = 'input window, operand 0, single buffered']
    #allocation3 [shape = 's32[1]{0}', space=sflag, size = 0x4, scoped, tag = 'scoped memory for tpu_custom_call.1']
    #allocation4 [shape = 's32[1]{0}', space=sflag, size = 0x4, scoped, tag = 'scoped memory for tpu_custom_call.1']
    #allocation5 [shape = 'u8[16384]{0}', space=vmem, size = 0x4000, scoped, tag = 'input window, operand 1, single buffered']
    #allocation6 [shape = 's32[1]{0}', space=sflag, size = 0x4, scoped, tag = 'scoped memory for tpu_custom_call.1']
    #allocation7 [shape = 'u8[4096]{0}', space=vmem, size = 0x1000, scoped, tag = 'output window, operand 0, single buffered']
    %8 = vsyncpa [#allocation3], 0
    %9 = vsyncpa [#allocation6], 0
    %10 = vsyncpa [#allocation4], 0
    // Predicated region
    $region2: #{tpu_custom_call.1} parent=1 // pred_check
      _
    $region3: #{tpu_custom_call.1} parent=1 // pred_check_branch
      %12 = sbr.rel (0) target = $region5
    $region4: #{tpu_custom_call.1} parent=1 // pred_region
      %s14 = ssub.s32 128, 32
      %15 = vsyncadd [#allocation3], %s14
      %s16 = sshll.u32 [#allocation2], 4
      %s17 = int_to_ptr.vmem [resolvable:$true] %s16
      %22 = dma.hbm_to_vmem [thread:$0]  %s0, 32, %s17, [#allocation3], 32, 32, 2
    $region5: #{tpu_custom_call.1} parent=1 // pred_fallthru
      _
    // Predicated region
    $region6: #{tpu_custom_call.1} parent=1 // pred_check
      _
    $region7: #{tpu_custom_call.1} parent=1 // pred_check_branch
      %24 = sbr.rel (0) target = $region9
    $region8: #{tpu_custom_call.1} parent=1 // pred_region
      %s26 = ssub.s32 512, 512
      %27 = vsyncadd [#allocation6], %s26
      %s28 = sshll.u32 [#allocation5], 4
      %s29 = int_to_ptr.vmem [resolvable:$true] %s28
      %34 = dma.hbm_to_vmem [thread:$0]  %s1, 512, %s29, [#allocation6], 128, 128, 8
    $region9: #{tpu_custom_call.1} parent=1 // pred_fallthru
      _
    // Predicated region
    $region10: #{tpu_custom_call.1} parent=1 // pred_check
      _
    $region11: #{tpu_custom_call.1} parent=1 // pred_check_branch
      %36 = sbr.rel (0) target = $region13
    $region12: #{tpu_custom_call.1} parent=1 // pred_region
      _
    $region13: #{tpu_custom_call.1} parent=1 // pred_fallthru
      _
    // Predicated region
    $region14: #{tpu_custom_call.1} parent=1 // pred_check
      _
    $region15: #{tpu_custom_call.1} parent=1 // pred_check_branch
      %38 = sbr.rel (0) target = $region17
    $region16: #{tpu_custom_call.1} parent=1 // pred_region
      %39 = dma.done [#allocation3], 128
    $region17: #{tpu_custom_call.1} parent=1 // pred_fallthru
      _
    // Predicated region
    $region18: #{tpu_custom_call.1} parent=1 // pred_check
      _
    $region19: #{tpu_custom_call.1} parent=1 // pred_check_branch
      %41 = sbr.rel (0) target = $region21
    $region20: #{tpu_custom_call.1} parent=1 // pred_region
      %42 = dma.done [#allocation6], 512
    $region21: #{tpu_custom_call.1} parent=1 // pred_fallthru
      _
    %v43 = vld [vmem:[#allocation2] sm:$0xff]
    %v44 = vld [vmem:[#allocation5] sm:$0xff]
    %v45 = vld [vmem:[#allocation5 + $0x8] sm:$0xff]
    %v46 = vld [vmem:[#allocation5 + $0x10] sm:$0xff]
    %v47 = vld [vmem:[#allocation5 + $0x18] sm:$0xff]
    %v48 = vld [vmem:[%s2] sm:$0x1]
    %v50 = vlaneseq
    %v51 = vshrl.u32 %v50, 7
    %v52 = vsub.s32 0, %v51
    %v53 = vrot.slane %v48, %v52
    %vm55 = vcmask 261120
    %v57 = vsel %vm55, %v43, 0
    %59 = vmatprep.subr.mxu0 0.0
    %60 = vmatpush1.msra.mxu0 0.0
    %61 = vmatprep.subr.mxu0 0.0
    %62 = vmatpush1.msra.mxu0 0.0
    %63 = vmatprep.subr.mxu0 0.0
    %64 = vmatpush1.msra.mxu0 0.0
    %65 = vmatprep.subr.mxu0 0.0
    %66 = vmatpush1.msra.mxu0 0.0
    %67 = vmatprep.subr.mxu0 0.0
    %68 = vmatpush1.msra.mxu0 0.0
    %69 = vmatprep.subr.mxu0 0.0
    %70 = vmatpush1.msra.mxu0 0.0
    %71 = vmatprep.subr.mxu0 0.0
    %72 = vmatpush1.msra.mxu0 0.0
    %73 = vmatprep.subr.mxu0 0.0
    %74 = vmatpush1.msra.mxu0 0.0
    %75 = vmatprep.subr.mxu0 0.0
    %76 = vmatpush1.msra.mxu0 0.0
    %77 = vmatprep.subr.mxu0 0.0
    %78 = vmatpush1.msra.mxu0 0.0
    %79 = vmatprep.subr.mxu0 0.0
    %80 = vmatpush1.msra.mxu0 0.0
    %81 = vmatprep.subr.mxu0 0.0
    %82 = vmatpush1.msra.mxu0 0.0
    %83 = vmatprep.subr.mxu0 0.0
    %84 = vmatpush1.msra.mxu0 %v47
    %85 = vmatprep.subr.mxu0 0.0
    %86 = vmatpush1.msra.mxu0 %v46
    %87 = vmatprep.subr.mxu0 0.0
    %88 = vmatpush1.msra.mxu0 %v45
    %89 = vmatprep.subr.mxu0 0.0
    %90 = vmatpush1.msra.mxu0 %v44
    %91 = vmatprep.subr.mxu0 0.0
    %92 = vmatpush2.msra.mxu0 0.0
    %93 = vmatprep.subr.mxu0 0.0
    %94 = vmatpush2.msra.mxu0 0.0
    %95 = vmatprep.subr.mxu0 0.0
    %96 = vmatpush2.msra.mxu0 0.0
    %97 = vmatprep.subr.mxu0 0.0
    %98 = vmatpush2.msra.mxu0 0.0
    %99 = vmatprep.subr.mxu0 0.0
    %100 = vmatpush2.msra.mxu0 0.0
    %101 = vmatprep.subr.mxu0 0.0
    %102 = vmatpush2.msra.mxu0 0.0
    %103 = vmatprep.subr.mxu0 0.0
    %104 = vmatpush2.msra.mxu0 0.0
    %105 = vmatprep.subr.mxu0 0.0
    %106 = vmatpush2.msra.mxu0 0.0
    %107 = vmatprep.subr.mxu0 0.0
    %108 = vmatpush2.msra.mxu0 0.0
    %109 = vmatprep.subr.mxu0 0.0
    %110 = vmatpush2.msra.mxu0 0.0
    %111 = vmatprep.subr.mxu0 0.0
    %112 = vmatpush2.msra.mxu0 0.0
    %113 = vmatprep.subr.mxu0 0.0
    %114 = vmatpush2.msra.mxu0 0.0
    %115 = vmatprep.subr.mxu0 0.0
    %116 = vmatpush2.msra.mxu0 0.0
    %117 = vmatprep.subr.mxu0 0.0
    %118 = vmatpush2.msra.mxu0 0.0
    %119 = vmatprep.subr.mxu0 0.0
    %120 = vmatpush2.msra.mxu0 0.0
    %121 = vmatprep.subr.mxu0 0.0
    %122 = vmatpush2.msra.mxu0 0.0
    %123 = vmatprep.mubr.f32.mxu0 0.0
    %124 = vmatmul.mubr.f32.gmra.mxu0 %v57
    %v125 = vpop.f32.mrf.mxu0
    %v126 = vadd.f32 %v53, %v125
    %v127 = vpop.f32.mrf.mxu0
    %128 = vdwg.mxu0
    %129 = vst [vmem:[#allocation7] sm:$0xff] %v126
    // Predicated region
    $region22: #{tpu_custom_call.1} parent=1 // pred_check
      _
    $region23: #{tpu_custom_call.1} parent=1 // pred_check_branch
      %131 = sbr.rel (0) target = $region25
    $region24: #{tpu_custom_call.1} parent=1 // pred_region
      %s133 = ssub.s32 128, 32
      %134 = vsyncadd [#allocation4], %s133
      %s135 = sshll.u32 [#allocation7], 4
      %s136 = int_to_ptr.vmem [resolvable:$true] %s135
      %141 = dma.vmem_to_hbm [thread:$0]  %s136, 32, %s3, [#allocation4], 32, 32, 2
    $region25: #{tpu_custom_call.1} parent=1 // pred_fallthru
      _
    // Predicated region
    $region26: #{tpu_custom_call.1} parent=1 // pred_check
      _
    $region27: #{tpu_custom_call.1} parent=1 // pred_check_branch
      %143 = sbr.rel (0) target = $region29
    $region28: #{tpu_custom_call.1} parent=1 // pred_region
      %144 = dma.done [#allocation4], 128
    $region29: #{tpu_custom_call.1} parent=1 // pred_fallthru
      _
    %145 = vsyncpa [#allocation3], 1
    %146 = vsyncpa [#allocation6], 1
    %147 = vsyncpa [#allocation4], 1

</llo_original>
